<compile_context>
chip_gen: v5e
topology: v5e:2x2
jax: 0.10.0
libtpu: 0.0.40
codegen_flags: <defaults>
</compile_context>

<pallas_src>
import math

import jax
import jax.numpy as jnp
from jax.experimental import pallas as pl
from jax.experimental.pallas import tpu as pltpu


def _round_up(v, mult):
    return ((v + mult - 1) // mult) * mult


def _make_arcface_kernel(s, cos_m, sin_m, th, mm, easy_margin, ls_eps, out_features, tc):
    """tc is the static C-tile size (needed to offset the column iota)."""

    def kernel(x_ref, w_ref, winv_ref, label_ref, o_ref):
        j = pl.program_id(1)

        x = x_ref[...].astype(jnp.float32)        # (TB, D)
        w = w_ref[...].astype(jnp.float32)        # (TC, D)
        w_inv = winv_ref[...]                     # (TC, 1) f32, precomputed 1/||w||
        label = label_ref[...]                    # (TB, 1) int32

        # F.normalize(x, dim=1): x * rsqrt(max(sum(x^2), eps)) == x / max(||x||, 1e-12)
        x_inv = jax.lax.rsqrt(
            jnp.maximum(jnp.sum(x * x, axis=-1, keepdims=True), 1e-24))
        x_n = (x * x_inv).astype(jnp.bfloat16)
        w_n = (w * w_inv).astype(jnp.bfloat16)

        # cosine = x_n @ w_n.T : contract last dims of both -> MXU, f32 accumulate.
        cosine = jax.lax.dot_general(
            x_n, w_n,
            dimension_numbers=(((1,), (1,)), ((), ())),
            preferred_element_type=jnp.float32)   # (TB, TC)

        tb, tcl = cosine.shape
        col_ids = jax.lax.broadcasted_iota(jnp.int32, (tb, tcl), 1) + j * tc
        is_label = col_ids == label               # (TB, TC) bool, (TB,1) broadcast

        if ls_eps > 0.0:
            # Full-tile phi is required (every column is blended).
            sine = jnp.sqrt(jnp.clip(1.0 - cosine * cosine, 0.0, 1.0))
            phi = cosine * cos_m - sine * sin_m
            if easy_margin:
                phi = jnp.where(cosine > 0.0, phi, cosine)
            else:
                phi = jnp.where(cosine > th, phi, cosine - mm)
            a = (1.0 - ls_eps) + ls_eps / out_features   # one_hot value at label
            b = ls_eps / out_features                    # one_hot value elsewhere
            out = jnp.where(is_label,
                            a * phi + (1.0 - a) * cosine,
                            b * phi + (1.0 - b) * cosine)
        else:
            # Only the label column per row needs phi: extract those B values,
            # do the transcendental work on (TB,1) instead of (TB,TC).
            cos_t = jnp.sum(jnp.where(is_label, cosine, 0.0),
                            axis=-1, keepdims=True)       # (TB, 1)
            sin_t = jnp.sqrt(jnp.clip(1.0 - cos_t * cos_t, 0.0, 1.0))
            phi_t = cos_t * cos_m - sin_t * sin_m
            if easy_margin:
                phi_t = jnp.where(cos_t > 0.0, phi_t, cos_t)
            else:
                phi_t = jnp.where(cos_t > th, phi_t, cos_t - mm)
            out = jnp.where(is_label, phi_t, cosine)

        o_ref[...] = (out * s).astype(o_ref.dtype)

    return kernel


def _choose_tiles(batch, n_classes, dim):
    tb = min(128, _round_up(batch, 8))
    # Keep the double-buffered (TC, D) f32 weight tile within ~8 MiB so the
    # default scoped-VMEM limit is comfortable on v5e/v6e and v7x (64 MiB VMEM).
    budget = 8 * 1024 * 1024
    tc_cap = max(128, (budget // (2 * 4 * max(dim, 1))) // 128 * 128)
    tc = min(512, tc_cap, _round_up(n_classes, 128))
    return tb, tc


def arcface_forward(x, weight, label, *, s=30.0, m=0.3, easy_margin=False, ls_eps=0.0):
    """x: (B, D) f32, weight: (C, D) f32, label: (B,) int -> (B, C) f32 logits."""
    B, D = x.shape
    C, D2 = weight.shape
    assert D == D2

    cos_m = math.cos(m)
    sin_m = math.sin(m)
    th = math.cos(math.pi - m)
    mm = math.sin(math.pi - m) * m

    TB, TC = _choose_tiles(B, C, D)
    Bp = _round_up(B, TB)
    Cp = _round_up(C, TC)

    x_p = x if Bp == B else jnp.pad(x, ((0, Bp - B), (0, 0)))
    w_p = weight if Cp == C else jnp.pad(weight, ((0, Cp - C), (0, 0)))
    label_i = label.astype(jnp.int32)
    if Bp != B:
        label_i = jnp.pad(label_i, (0, Bp - B), constant_values=-1)  # never matches
    label2d = label_i.reshape(Bp, 1)

    # Hoisted weight norm: 1 / max(||w||, 1e-12) as a (Cp, 1) f32 column.
    w_sq = jnp.sum(w_p.astype(jnp.float32) ** 2, axis=-1, keepdims=True)
    w_inv = jax.lax.rsqrt(jnp.maximum(w_sq, 1e-24))

    kernel = _make_arcface_kernel(s, cos_m, sin_m, th, mm, easy_margin, ls_eps, C, TC)

    out = pl.pallas_call(
        kernel,
        out_shape=jax.ShapeDtypeStruct((Bp, Cp), jnp.float32),
        grid_spec=pltpu.PrefetchScalarGridSpec(
            num_scalar_prefetch=0,
            grid=(Bp // TB, Cp // TC),
            in_specs=[
                pl.BlockSpec((TB, D), lambda i, j: (i, 0)),   # x tile
                pl.BlockSpec((TC, D), lambda i, j: (j, 0)),   # weight tile
                pl.BlockSpec((TC, 1), lambda i, j: (j, 0)),   # 1/||w|| tile
                pl.BlockSpec((TB, 1), lambda i, j: (i, 0)),   # labels tile
            ],
            out_specs=pl.BlockSpec((TB, TC), lambda i, j: (i, j)),
        ),
        compiler_params=pltpu.CompilerParams(
            dimension_semantics=("parallel", "parallel")),
    )(x_p, w_p, w_inv, label2d)

    return out[:B, :C]


def _xavier_uniform(key, out_features, in_features):
    bound = math.sqrt(6.0 / (in_features + out_features))
    return jax.random.uniform(
        key, (out_features, in_features), jnp.float32, minval=-bound, maxval=bound)


def _reference(x, weight, label, s, m, easy_margin, ls_eps):
    """Pure-JAX f32 reference matching the PyTorch module."""
    cos_m, sin_m = math.cos(m), math.sin(m)
    th = math.cos(math.pi - m)
    mm = math.sin(math.pi - m) * m
    x_n = x / jnp.maximum(jnp.linalg.norm(x, axis=1, keepdims=True), 1e-12)
    w_n = weight / jnp.maximum(jnp.linalg.norm(weight, axis=1, keepdims=True), 1e-12)
    cosine = x_n @ w_n.T
    sine = jnp.sqrt(jnp.clip(1.0 - cosine * cosine, 0.0, 1.0))
    phi = cosine * cos_m - sine * sin_m
    if easy_margin:
        phi = jnp.where(cosine > 0.0, phi, cosine)
    else:
        phi = jnp.where(cosine > th, phi, cosine - mm)
    one_hot = jax.nn.one_hot(label, weight.shape[0], dtype=jnp.float32)
    if ls_eps > 0:
        one_hot = (1.0 - ls_eps) * one_hot + ls_eps / weight.shape[0]
    return s * (one_hot * phi + (1.0 - one_hot) * cosine)


if __name__ == "__main__":
    in_features = 32
    out_features = 16
    batch = 8

    key = jax.random.PRNGKey(0)
    kx, kw, kl = jax.random.split(key, 3)

    x = jax.random.normal(kx, (batch, in_features), jnp.float32)
    weight = _xavier_uniform(kw, out_features, in_features)
    label = jax.random.randint(kl, (batch,), 0, out_features, jnp.int32)

    out = arcface_forward(x, weight, label, s=30.0, m=0.3, easy_margin=False, ls_eps=0.0)
    out = jax.block_until_ready(out)
    assert out.shape == (batch, out_features)

    ref = _reference(x, weight, label, 30.0, 0.3, False, 0.0)
    # bf16 MXU operands -> loosened tolerance vs the f32 reference.
    assert bool(jnp.all(jnp.isfinite(out)))
    assert bool(jnp.allclose(out, ref, atol=5e-1, rtol=0.0)), \
        float(jnp.max(jnp.abs(out - ref)))

    print("KERNEL_OK")
</pallas_src>

<mosaic_0001>
module attributes {stable_mosaic.version = 11 : i64} {
  func.func @kernel(%arg0: i32, %arg1: i32, %arg2: memref<8x32xf32, #tpu.memory_space<vmem>>, %arg3: memref<128x32xf32, #tpu.memory_space<vmem>>, %arg4: memref<128x1xf32, #tpu.memory_space<vmem>>, %arg5: memref<8x1xi32, #tpu.memory_space<vmem>>, %arg6: memref<8x128xf32, #tpu.memory_space<vmem>>) attributes {dimension_semantics = [#tpu.dimension_semantics<parallel>, #tpu.dimension_semantics<parallel>], iteration_bounds = array<i64: 1, 1>, scalar_prefetch = 0 : i64, scratch_operands = 0 : i64, tpu.core_type = #tpu.core_type<tc>, window_params = [{transform_indices = @transform_0, window_bounds = array<i64: 8, 32>}, {transform_indices = @transform_1, window_bounds = array<i64: 128, 32>}, {transform_indices = @transform_2, window_bounds = array<i64: 128, 1>}, {transform_indices = @transform_3, window_bounds = array<i64: 8, 1>}, {transform_indices = @transform_4, window_bounds = array<i64: 8, 128>}]} {
    %c0 = arith.constant 0 : index
    %c0_0 = arith.constant 0 : index
    %0 = vector.load %arg2[%c0, %c0_0] : memref<8x32xf32, #tpu.memory_space<vmem>>, vector<8x32xf32>
    %c0_1 = arith.constant 0 : index
    %c0_2 = arith.constant 0 : index
    %1 = vector.load %arg3[%c0_1, %c0_2] : memref<128x32xf32, #tpu.memory_space<vmem>>, vector<128x32xf32>
    %c0_3 = arith.constant 0 : index
    %c0_4 = arith.constant 0 : index
    %2 = vector.load %arg4[%c0_3, %c0_4] : memref<128x1xf32, #tpu.memory_space<vmem>>, vector<128x1xf32>
    %c0_5 = arith.constant 0 : index
    %c0_6 = arith.constant 0 : index
    %3 = vector.load %arg5[%c0_5, %c0_6] : memref<8x1xi32, #tpu.memory_space<vmem>>, vector<8x1xi32>
    %4 = arith.mulf %0, %0 : vector<8x32xf32>
    %cst = arith.constant dense<0.000000e+00> : vector<8xf32>
    %5 = vector.multi_reduction <add>, %4, %cst [1] : vector<8x32xf32> to vector<8xf32>
    %6 = vector.shape_cast %5 : vector<8xf32> to vector<8x1xf32>
    %cst_7 = arith.constant 1.000000e-24 : f32
    %7 = vector.broadcast %cst_7 : f32 to vector<8x1xf32>
    %8 = arith.maximumf %6, %7 : vector<8x1xf32>
    %9 = math.rsqrt %8 : vector<8x1xf32>
    %10 = vector.broadcast %9 : vector<8x1xf32> to vector<8x32xf32>
    %11 = arith.mulf %0, %10 : vector<8x32xf32>
    %12 = arith.truncf %11 : vector<8x32xf32> to vector<8x32xbf16>
    %13 = vector.broadcast %2 : vector<128x1xf32> to vector<128x32xf32>
    %14 = arith.mulf %1, %13 : vector<128x32xf32>
    %15 = arith.truncf %14 : vector<128x32xf32> to vector<128x32xbf16>
    %cst_8 = arith.constant dense<0.000000e+00> : vector<8x128xf32>
    %16 = tpu.matmul %12, %15, %cst_8 {dimension_numbers = #tpu.dot_dimension_numbers<[1], [1], [0], [0], [0, 0, 1, 0], [], []>} : vector<8x32xbf16>, vector<128x32xbf16>, vector<8x128xf32> -> vector<8x128xf32>
    %17 = tpu.iota {dimensions = array<i32: 1>} : vector<8x128xi32>
    %c128_i32 = arith.constant 128 : i32
    %18 = arith.muli %arg1, %c128_i32 : i32
    %19 = vector.broadcast %18 : i32 to vector<8x128xi32>
    %20 = arith.addi %17, %19 : vector<8x128xi32>
    %21 = vector.broadcast %3 : vector<8x1xi32> to vector<8x128xi32>
    %22 = arith.cmpi eq, %20, %21 : vector<8x128xi32>
    %cst_9 = arith.constant 0.000000e+00 : f32
    %23 = vector.broadcast %cst_9 : f32 to vector<8x128xf32>
    %24 = arith.select %22, %16, %23 : vector<8x128xi1>, vector<8x128xf32>
    %cst_10 = arith.constant dense<0.000000e+00> : vector<8xf32>
    %25 = vector.multi_reduction <add>, %24, %cst_10 [1] : vector<8x128xf32> to vector<8xf32>
    %26 = vector.shape_cast %25 : vector<8xf32> to vector<8x1xf32>
    %27 = arith.mulf %26, %26 : vector<8x1xf32>
    %cst_11 = arith.constant 1.000000e+00 : f32
    %28 = vector.broadcast %cst_11 : f32 to vector<8x1xf32>
    %29 = arith.subf %28, %27 : vector<8x1xf32>
    %cst_12 = arith.constant 0.000000e+00 : f32
    %cst_13 = arith.constant 1.000000e+00 : f32
    %30 = vector.broadcast %cst_12 : f32 to vector<8x1xf32>
    %31 = arith.maximumf %30, %29 : vector<8x1xf32>
    %32 = vector.broadcast %cst_13 : f32 to vector<8x1xf32>
    %33 = arith.minimumf %32, %31 : vector<8x1xf32>
    %34 = math.sqrt %33 : vector<8x1xf32>
    %cst_14 = arith.constant 0.955336511 : f32
    %35 = vector.broadcast %cst_14 : f32 to vector<8x1xf32>
    %36 = arith.mulf %26, %35 : vector<8x1xf32>
    %cst_15 = arith.constant 0.295520216 : f32
    %37 = vector.broadcast %cst_15 : f32 to vector<8x1xf32>
    %38 = arith.mulf %34, %37 : vector<8x1xf32>
    %39 = arith.subf %36, %38 : vector<8x1xf32>
    %cst_16 = arith.constant -0.955336511 : f32
    %40 = vector.broadcast %cst_16 : f32 to vector<8x1xf32>
    %41 = arith.cmpf ogt, %26, %40 : vector<8x1xf32>
    %cst_17 = arith.constant 0.0886560603 : f32
    %42 = vector.broadcast %cst_17 : f32 to vector<8x1xf32>
    %43 = arith.subf %26, %42 : vector<8x1xf32>
    %44 = arith.select %41, %39, %43 : vector<8x1xi1>, vector<8x1xf32>
    %45 = vector.shape_cast %44 : vector<8x1xf32> to vector<8x1xf32>
    %46 = vector.broadcast %45 : vector<8x1xf32> to vector<8x128xf32>
    %47 = arith.select %22, %46, %16 : vector<8x128xi1>, vector<8x128xf32>
    %cst_18 = arith.constant 3.000000e+01 : f32
    %48 = vector.broadcast %cst_18 : f32 to vector<8x128xf32>
    %49 = arith.mulf %47, %48 : vector<8x128xf32>
    %c0_19 = arith.constant 0 : index
    %c0_20 = arith.constant 0 : index
    %50 = vector.load %arg6[%c0_19, %c0_20] : memref<8x128xf32, #tpu.memory_space<vmem>>, vector<8x128xf32>
    tpu.vector_store %arg6[%c0_19, %c0_20], %49 {strides = array<i32>} : memref<8x128xf32, #tpu.memory_space<vmem>>, vector<8x128xf32>,
    return
  }
  func.func @transform_0(%arg0: i32, %arg1: i32) -> (i32, i32) {
    %c0_i32 = arith.constant 0 : i32
    %c0_i32_0 = arith.constant 0 : i32
    return %arg0, %c0_i32 : i32, i32
  }
  func.func @transform_1(%arg0: i32, %arg1: i32) -> (i32, i32) {
    %c0_i32 = arith.constant 0 : i32
    %c0_i32_0 = arith.constant 0 : i32
    return %arg1, %c0_i32 : i32, i32
  }
  func.func @transform_2(%arg0: i32, %arg1: i32) -> (i32, i32) {
    %c0_i32 = arith.constant 0 : i32
    %c0_i32_0 = arith.constant 0 : i32
    return %arg1, %c0_i32 : i32, i32
  }
  func.func @transform_3(%arg0: i32, %arg1: i32) -> (i32, i32) {
    %c0_i32 = arith.constant 0 : i32
    %c0_i32_0 = arith.constant 0 : i32
    return %arg0, %c0_i32 : i32, i32
  }
  func.func @transform_4(%arg0: i32, %arg1: i32) -> (i32, i32) {
    %c0_i32 = arith.constant 0 : i32
    return %arg0, %arg1 : i32, i32
  }
}

</mosaic_0001>

<llo_original>
// kernel: tpu_custom_call.1
$region0: #{tpu_custom_call.1}
  #allocation0 [shape = 'u32[]', space=smem, size = 0x4, offset = 0x4, fixed_abs, tag = 'smem constant byte address 0x4 - core index']
  #allocation1 [shape = 'u32[72,128]{1,0:T(1,128)}', space=vmem, size = 0x9000, scoped, tag = 'internal scratch']
  %s0 = inlined_call_operand.vmem [shape: f32[8,32], index: 0, kind: input, shape index: {}]
  %s1 = inlined_call_operand.vmem [shape: f32[128,32], index: 1, kind: input, shape index: {}]
  %s2 = inlined_call_operand.vmem [shape: f32[128,1], index: 2, kind: input, shape index: {}]
  %s3 = inlined_call_operand.vmem [shape: s32[8,1], index: 3, kind: input, shape index: {}]
  %s4 = inlined_call_operand.hbm [shape: f32[8,128], index: 4, kind: output, shape index: {}]
  %s5 = sld [smem:[#allocation0]]
  $region26: #{tpu_custom_call.1} parent=0
    _
  %s7 = ssub.s32 1, %s5
  %s8 = scalar_select 0, %s7, %s5
  $region1: #{tpu_custom_call.1} parent=0
    #allocation2 [shape = 'u8[4096]{0}', space=vmem, size = 0x1000, scoped, tag = 'output window, operand 0, single buffered']
    #allocation3 [shape = 's32[1]{0}', space=sflag, size = 0x4, scoped, tag = 'scoped memory for tpu_custom_call.1']
    %9 = vsyncpa [#allocation3], 0
    // Predicated region
    $region2: #{tpu_custom_call.1} parent=1 // pred_check
      _
    $region3: #{tpu_custom_call.1} parent=1 // pred_check_branch
      %11 = sbr.rel (0) target = $region5
    $region4: #{tpu_custom_call.1} parent=1 // pred_region
      _
    $region5: #{tpu_custom_call.1} parent=1 // pred_fallthru
      _
    // Predicated region
    $region6: #{tpu_custom_call.1} parent=1 // pred_check
      _
    $region7: #{tpu_custom_call.1} parent=1 // pred_check_branch
      %13 = sbr.rel (0) target = $region9
    $region8: #{tpu_custom_call.1} parent=1 // pred_region
      _
    $region9: #{tpu_custom_call.1} parent=1 // pred_fallthru
      _
    // Predicated region
    $region10: #{tpu_custom_call.1} parent=1 // pred_check
      _
    $region11: #{tpu_custom_call.1} parent=1 // pred_check_branch
      %15 = sbr.rel (0) target = $region13
    $region12: #{tpu_custom_call.1} parent=1 // pred_region
      _
    $region13: #{tpu_custom_call.1} parent=1 // pred_fallthru
      _
    // Predicated region
    $region14: #{tpu_custom_call.1} parent=1 // pred_check
      _
    $region15: #{tpu_custom_call.1} parent=1 // pred_check_branch
      %17 = sbr.rel (0) target = $region17
    $region16: #{tpu_custom_call.1} parent=1 // pred_region
      _
    $region17: #{tpu_custom_call.1} parent=1 // pred_fallthru
      _
    %v18 = vld [vmem:[%s0] sm:$0xff]
    %v19 = vld [vmem:[%s1] sm:$0xff]
    %v20 = vld [vmem:[%s1 + $0x8] sm:$0xff]
    %v21 = vld [vmem:[%s1 + $0x10] sm:$0xff]
    %v22 = vld [vmem:[%s1 + $0x18] sm:$0xff]
    %v23 = vld [vmem:[%s1 + $0x20] sm:$0xff]
    %v24 = vld [vmem:[%s1 + $0x28] sm:$0xff]
    %v25 = vld [vmem:[%s1 + $0x30] sm:$0xff]
    %v26 = vld [vmem:[%s1 + $0x38] sm:$0xff]
    %v27 = vld [vmem:[%s1 + $0x40] sm:$0xff]
    %v28 = vld [vmem:[%s1 + $0x48] sm:$0xff]
    %v29 = vld [vmem:[%s1 + $0x50] sm:$0xff]
    %v30 = vld [vmem:[%s1 + $0x58] sm:$0xff]
    %v31 = vld [vmem:[%s1 + $0x60] sm:$0xff]
    %v32 = vld [vmem:[%s1 + $0x68] sm:$0xff]
    %v33 = vld [vmem:[%s1 + $0x70] sm:$0xff]
    %v34 = vld [vmem:[%s1 + $0x78] sm:$0xff]
    %v35 = vld [vmem:[%s2] sm:$0xff]
    %v36 = vld [vmem:[%s2 + $0x8] sm:$0xff]
    %v37 = vld [vmem:[%s2 + $0x10] sm:$0xff]
    %v38 = vld [vmem:[%s2 + $0x18] sm:$0xff]
    %v39 = vld [vmem:[%s2 + $0x20] sm:$0xff]
    %v40 = vld [vmem:[%s2 + $0x28] sm:$0xff]
    %v41 = vld [vmem:[%s2 + $0x30] sm:$0xff]
    %v42 = vld [vmem:[%s2 + $0x38] sm:$0xff]
    %v43 = vld [vmem:[%s2 + $0x40] sm:$0xff]
    %v44 = vld [vmem:[%s2 + $0x48] sm:$0xff]
    %v45 = vld [vmem:[%s2 + $0x50] sm:$0xff]
    %v46 = vld [vmem:[%s2 + $0x58] sm:$0xff]
    %v47 = vld [vmem:[%s2 + $0x60] sm:$0xff]
    %v48 = vld [vmem:[%s2 + $0x68] sm:$0xff]
    %v49 = vld [vmem:[%s2 + $0x70] sm:$0xff]
    %v50 = vld [vmem:[%s2 + $0x78] sm:$0xff]
    %v51 = vld [vmem:[%s3] sm:$0xff]
    %v52 = vmul.f32 %v18, %v18
    %vm53 = vcmask 261120
    %v54 = vsel %vm53, %v52, 0.0
    %55 = vadd.xlane.f32.xlu0 %v54
    %v56 = vpop.xlane.xlu0 %55
    %v57 = vmax.f32 %v56, 1e-24
    %v58 = vrsqrt.pop %v57
    %v59 = vmul.f32 %v58, %v57
    %v60 = vmul.f32 %v59, %v58
    %v61 = vmul.f32 0.5, %v60
    %v62 = vsub.f32 1.5, %v61
    %v63 = vmul.f32 %v58, %v62
    %vm64 = vweird.f32 %v57
    %vm65 = vweird.f32 %v58
    %vm66 = vmor %vm64, %vm65
    %v67 = vsel %vm66, %v58, %v63
    %v68 = vmul.f32 %v18, %v67
    %v69 = vpack.c.bf16 %v68, %v68
    %71 = vset.pattern.permute.xlu0 0
    %72 = vperm.xlu0 %71, %v35
    %v73 = vpop.permute.xlu0 %72
    %76 = vset.pattern.permute.xlu0 0
    %77 = vperm.xlu0 %76, %v36
    %v78 = vpop.permute.xlu0 %77
    %81 = vset.pattern.permute.xlu0 0
    %82 = vperm.xlu0 %81, %v37
    %v83 = vpop.permute.xlu0 %82
    %86 = vset.pattern.permute.xlu0 0
    %87 = vperm.xlu0 %86, %v38
    %v88 = vpop.permute.xlu0 %87
    %91 = vset.pattern.permute.xlu0 0
    %92 = vperm.xlu0 %91, %v39
    %v93 = vpop.permute.xlu0 %92
    %96 = vset.pattern.permute.xlu0 0
    %97 = vperm.xlu0 %96, %v40
    %v98 = vpop.permute.xlu0 %97
    %101 = vset.pattern.permute.xlu0 0
    %102 = vperm.xlu0 %101, %v41
    %v103 = vpop.permute.xlu0 %102
    %106 = vset.pattern.permute.xlu0 0
    %107 = vperm.xlu0 %106, %v42
    %v108 = vpop.permute.xlu0 %107
    %111 = vset.pattern.permute.xlu0 0
    %112 = vperm.xlu0 %111, %v43
    %v113 = vpop.permute.xlu0 %112
    %116 = vset.pattern.permute.xlu0 0
    %117 = vperm.xlu0 %116, %v44
    %v118 = vpop.permute.xlu0 %117
    %121 = vset.pattern.permute.xlu0 0
    %122 = vperm.xlu0 %121, %v45
    %v123 = vpop.permute.xlu0 %122
    %126 = vset.pattern.permute.xlu0 0
    %127 = vperm.xlu0 %126, %v46
    %v128 = vpop.permute.xlu0 %127
    %131 = vset.pattern.permute.xlu0 0
    %132 = vperm.xlu0 %131, %v47
    %v133 = vpop.permute.xlu0 %132
    %136 = vset.pattern.permute.xlu0 0
    %137 = vperm.xlu0 %136, %v48
    %v138 = vpop.permute.xlu0 %137
    %141 = vset.pattern.permute.xlu0 0
    %142 = vperm.xlu0 %141, %v49
    %v143 = vpop.permute.xlu0 %142
    %146 = vset.pattern.permute.xlu0 0
    %147 = vperm.xlu0 %146, %v50
    %v148 = vpop.permute.xlu0 %147
    %v150 = vmul.f32 %v19, %v73
    %v151 = vmul.f32 %v20, %v78
    %v152 = vmul.f32 %v21, %v83
    %v153 = vmul.f32 %v22, %v88
    %v154 = vmul.f32 %v23, %v93
    %v155 = vmul.f32 %v24, %v98
    %v156 = vmul.f32 %v25, %v103
    %v157 = vmul.f32 %v26, %v108
    %v158 = vmul.f32 %v27, %v113
    %v159 = vmul.f32 %v28, %v118
    %v160 = vmul.f32 %v29, %v123
    %v161 = vmul.f32 %v30, %v128
    %v162 = vmul.f32 %v31, %v133
    %v163 = vmul.f32 %v32, %v138
    %v164 = vmul.f32 %v33, %v143
    %v165 = vmul.f32 %v34, %v148
    %v166 = vpack.c.bf16 %v151, %v150
    %v167 = vpack.c.bf16 %v153, %v152
    %v168 = vpack.c.bf16 %v155, %v154
    %v169 = vpack.c.bf16 %v157, %v156
    %v170 = vpack.c.bf16 %v159, %v158
    %v171 = vpack.c.bf16 %v161, %v160
    %v172 = vpack.c.bf16 %v163, %v162
    %v173 = vpack.c.bf16 %v165, %v164
    %v175 = vsel %vm53, %v69, 0
    %v178 = vsel %vm53, %v166, 0
    %v181 = vsel %vm53, %v167, 0
    %v184 = vsel %vm53, %v168, 0
    %v187 = vsel %vm53, %v169, 0
    %v190 = vsel %vm53, %v170, 0
    %v193 = vsel %vm53, %v171, 0
    %v196 = vsel %vm53, %v172, 0
    %v199 = vsel %vm53, %v173, 0
    %201 = vmatpush.bf16.xpose.msra.mxu0 %v199
    %202 = vmatpush.bf16.xpose.msra.mxu0 %v196
    %203 = vmatpush.bf16.xpose.msra.mxu0 %v193
    %204 = vmatpush.bf16.xpose.msra.mxu0 %v190
    %205 = vmatpush.bf16.xpose.msra.mxu0 %v187
    %206 = vmatpush.bf16.xpose.msra.mxu0 %v184
    %207 = vmatpush.bf16.xpose.msra.mxu0 %v181
    %208 = vmatpush.bf16.xpose.msra.mxu0 %v178
    %209 = vmatmul.bf16.gmra.mxu0 %v175
    %v210 = vpop.f32.mrf.mxu0
    %v211 = vadd.f32 0.0, %v210
    %v212 = vpop.f32.mrf.mxu0
    %213 = vdwg.mxu0
    %v214 = vlaneseq
    %v215 = vand.u32 %v214, 127
    %s216 = smul.u32 0, 128
    %v217 = vstv %s216
    %v218 = vadd.s32 %v215, %v217
    %219 = vset.pattern.permute.xlu0 0
    %220 = vperm.xlu0 %219, %v51
    %v221 = vpop.permute.xlu0 %220
    %vm222 = vcmp.eq.s32.totalorder %v218, %v221
    %v223 = vsel %vm222, %v211, 0.0
    %224 = vadd.xlane.f32.xlu0 %v223
    %v225 = vpop.xlane.xlu0 %224
    %v226 = vmul.f32 %v225, %v225
    %v227 = vsub.f32 1.0, %v226
    %v228 = vmax.f32 %v227, 0.0
    %v229 = vmin.f32 %v228, 1.0
    %v230 = vrsqrt.pop %v229
    %v231 = vmul.f32 %v230, %v229
    %v232 = vmul.f32 %v231, %v230
    %v233 = vmul.f32 0.5, %v232
    %v234 = vsub.f32 1.5, %v233
    %v235 = vmul.f32 %v230, %v234
    %v236 = vmul.f32 %v229, %v235
    %vm237 = vcmp.eq.f32.partialorder %v229, inf
    %v238 = vsel %vm237, %v229, %v236
    %vm239 = vcmp.eq.f32.partialorder %v229, 0.0
    %v240 = vand.u32 %v229, 2147483648
    %v241 = vsel %vm239, %v240, %v238
    %v242 = vmul.f32 %v225, 0.9553365
    %v243 = vmul.f32 %v241, 0.29552022
    %v244 = vsub.f32 %v242, %v243
    %vm245 = vcmp.gt.f32.partialorder %v225, -0.9553365
    %v246 = vsub.f32 %v225, 0.08865606
    %v247 = vsel %vm245, %v244, %v246
    %v248 = vsel %vm222, %v247, %v211
    %v249 = vmul.f32 %v248, 30.0
    %250 = vst [vmem:[#allocation2] sm:$0xff] %v249
    // Predicated region
    $region18: #{tpu_custom_call.1} parent=1 // pred_check
      _
    $region19: #{tpu_custom_call.1} parent=1 // pred_check_branch
      %252 = sbr.rel (0) target = $region21
    $region20: #{tpu_custom_call.1} parent=1 // pred_region
      %254 = vsyncadd [#allocation3], 0
      %s256 = sshll.u32 [#allocation2], 4
      %s257 = int_to_ptr.vmem [resolvable:$true] %s256
      %s258 = sshll.u32 %s4, 4
      %s259 = int_to_ptr.hbm [resolvable:$true] %s258
      %261 = dma.vmem_to_hbm [thread:$0]  %s257, 128, %s259, [#allocation3]
    $region21: #{tpu_custom_call.1} parent=1 // pred_fallthru
      _
    // Predicated region
    $region22: #{tpu_custom_call.1} parent=1 // pred_check
      _
    $region23: #{tpu_custom_call.1} parent=1 // pred_check_branch
      %263 = sbr.rel (0) target = $region25
    $region24: #{tpu_custom_call.1} parent=1 // pred_region
      %265 = dma.done [#allocation3], 128
    $region25: #{tpu_custom_call.1} parent=1 // pred_fallthru
      _
    %266 = vsyncpa [#allocation3], 1

</llo_original>
